<compile_context>
chip_gen: v5e
topology: v5e:2x2
jax: 0.10.0
libtpu: 0.0.40
codegen_flags: <defaults>
</compile_context>

<pallas_src>
import math

import jax
import jax.numpy as jnp
from jax.experimental import pallas as pl
from jax.experimental.pallas import tpu as pltpu


def _round_up(x, m):
    return ((x + m - 1) // m) * m


def _conv_taps_kernel(taps_ref, w_ref, b_ref, out_ref, acc_ref):
    """One (TM, C_out_pad) output tile, accumulated over the 9 conv taps.

    taps_ref: (1, TM, Cp)    bf16  -- tap k of the current row tile (streamed)
    w_ref   : (9, Cp, Cop)   bf16  -- all 9 tap weights (VMEM resident)
    b_ref   : (1, Cop)       f32   -- bias row (VMEM resident)
    out_ref : (TM, Cop)      f32
    acc_ref : (TM, Cop)      f32   -- VMEM scratch accumulator
    """
    k = pl.program_id(1)

    @pl.when(k == 0)
    def _():
        acc_ref[...] = jnp.zeros_like(acc_ref)

    acc_ref[...] += jnp.dot(taps_ref[0], w_ref[k],
                            preferred_element_type=jnp.float32)

    @pl.when(k == pl.num_programs(1) - 1)
    def _():
        out_ref[...] = (acc_ref[...] + b_ref[...]).astype(out_ref.dtype)


def _vmem_capacity_bytes():
    try:
        return int(pltpu.get_tpu_info().vmem_capacity_bytes)
    except Exception:
        return 64 * 1024 * 1024  # conservative default (v7x per-core VMEM)


def _pick_tile_m(m_rows, c_pad, c_out_pad, vmem_bytes):
    # Per-step VMEM: double-buffered bf16 tap tile + f32 accumulator scratch +
    # double-buffered f32 output tile. Weights/bias are resident once.
    budget = int(vmem_bytes * 0.6)                       # headroom below physical VMEM
    resident = 9 * c_pad * c_out_pad * 2 + c_out_pad * 4
    per_row = (2 * c_pad * 2) + (c_out_pad * 4) + (2 * c_out_pad * 4)
    tm = max(128, (budget - resident) // max(per_row, 1))
    tm = min(tm, 2048)
    tm = max(128, (tm // 128) * 128)                     # lane/sublane friendly
    tm = min(tm, _round_up(m_rows, 128))                 # don't exceed the problem
    return int(tm)


def downsample_forward(x_nchw, weight, bias, temb=None):
    """Forward of DownSample: Conv2d(in_ch, in_ch, 3, stride=2, padding=1).

    x_nchw : (N, C, H, W) float32
    weight : (C_out, C_in, 3, 3) float32  (C_out == C_in)
    bias   : (C_out,) float32
    temb   : ignored (matches the PyTorch module, which never uses it)
    """
    N, C, H, W = x_nchw.shape
    C_out, C_in, KH, KW = weight.shape
    assert C_in == C and KH == 3 and KW == 3
    Ho = (H + 2 - 3) // 2 + 1
    Wo = (W + 2 - 3) // 2 + 1
    M = N * Ho * Wo

    c_pad = _round_up(C_in, 128)        # lane-dense K per tap
    c_out_pad = _round_up(C_out, 128)   # lane-dense output

    vmem_bytes = _vmem_capacity_bytes()
    TM = _pick_tile_m(M, c_pad, c_out_pad, vmem_bytes)
    M_pad = _round_up(M, TM)

    # NCHW -> NHWC, zero-pad spatial by 1 and channels up to a 128 multiple.
    x = jnp.transpose(x_nchw, (0, 2, 3, 1))
    x_pad = jnp.pad(x, ((0, 0), (1, 1), (1, 1), (0, c_pad - C_in)))

    # 9 shifted stride-2 views, one per conv tap: (9, M_pad, c_pad) bf16.
    tap_views = []
    for kh in range(3):
        for kw in range(3):
            tap_views.append(
                x_pad[:, kh:kh + 2 * Ho - 1:2, kw:kw + 2 * Wo - 1:2, :]
                .reshape(M, c_pad))
    taps = jnp.stack(tap_views, axis=0)
    taps = jnp.pad(taps, ((0, 0), (0, M_pad - M), (0, 0))).astype(jnp.bfloat16)

    # Weight (C_out, C_in, kh, kw) -> (kh, kw, C_in, C_out) -> (9, c_pad, c_out_pad),
    # tap-major to match the tap_views ordering above.
    w = jnp.transpose(weight, (2, 3, 1, 0)).reshape(9, C_in, C_out)
    w = jnp.pad(w, ((0, 0), (0, c_pad - C_in), (0, c_out_pad - C_out)))
    w = w.astype(jnp.bfloat16)

    b_row = jnp.pad(bias, (0, c_out_pad - C_out)).reshape(1, c_out_pad)
    b_row = b_row.astype(jnp.float32)

    grid = (M_pad // TM, 9)
    flops = 2 * M_pad * (9 * c_pad) * c_out_pad
    bytes_accessed = (taps.size * 2 + w.size * 2 + b_row.size * 4
                      + M_pad * c_out_pad * 4)

    out_flat = pl.pallas_call(
        _conv_taps_kernel,
        out_shape=jax.ShapeDtypeStruct((M_pad, c_out_pad), jnp.float32),
        grid_spec=pltpu.PrefetchScalarGridSpec(
            num_scalar_prefetch=0,
            grid=grid,
            in_specs=[
                pl.BlockSpec((1, TM, c_pad), lambda i, k: (k, i, 0)),        # taps (streamed)
                pl.BlockSpec((9, c_pad, c_out_pad), lambda i, k: (0, 0, 0)),  # weights (resident)
                pl.BlockSpec((1, c_out_pad), lambda i, k: (0, 0)),            # bias (resident)
            ],
            out_specs=pl.BlockSpec((TM, c_out_pad), lambda i, k: (i, 0)),
            scratch_shapes=[pltpu.VMEM((TM, c_out_pad), jnp.float32)],
        ),
        compiler_params=pltpu.CompilerParams(
            dimension_semantics=("parallel", "arbitrary"),
            vmem_limit_bytes=int(vmem_bytes * 0.8),
        ),
        cost_estimate=pl.CostEstimate(
            flops=flops, transcendentals=0, bytes_accessed=bytes_accessed),
    )(taps, w, b_row)

    # Strip padding, (M, C_out) -> (N, Ho, Wo, C_out) -> NCHW.
    out = out_flat[:M, :C_out].reshape(N, Ho, Wo, C_out)
    return jnp.transpose(out, (0, 3, 1, 2))


def make_params(key, in_ch):
    """Deterministic parameter init matching the PyTorch module:
    xavier_uniform_ on conv weight, zeros_ on bias."""
    fan_in = in_ch * 3 * 3
    fan_out = in_ch * 3 * 3
    bound = math.sqrt(6.0 / (fan_in + fan_out))
    weight = jax.random.uniform(
        key, (in_ch, in_ch, 3, 3), dtype=jnp.float32, minval=-bound, maxval=bound
    )
    bias = jnp.zeros((in_ch,), dtype=jnp.float32)
    return weight, bias


if __name__ == "__main__":
    key = jax.random.PRNGKey(0)
    k_x, k_w, k_t = jax.random.split(key, 3)

    N, C, H, W = 2, 4, 16, 16
    x = jax.random.normal(k_x, (N, C, H, W), dtype=jnp.float32)
    temb = jax.random.normal(k_t, (N, 32), dtype=jnp.float32)  # unused, as in PyTorch
    weight, bias = make_params(k_w, C)

    y = downsample_forward(x, weight, bias, temb)
    y = jax.block_until_ready(y)

    # Reference: XLA native conv (same semantics as PyTorch Conv2d). The kernel uses
    # bf16 MXU inputs with f32 accumulation, so compare with a bf16-level tolerance.
    y_ref = jax.lax.conv_general_dilated(
        x, weight, window_strides=(2, 2), padding=((1, 1), (1, 1)),
        dimension_numbers=("NCHW", "OIHW", "NCHW"),
    ) + bias.reshape(1, C, 1, 1)
    assert y.shape == (N, C, H // 2, W // 2)
    assert jnp.allclose(y, y_ref, atol=5e-2, rtol=5e-2)

    print("KERNEL_OK")
</pallas_src>

<mosaic_0001>
module attributes {stable_mosaic.version = 11 : i64} {
  func.func @_conv_taps_kernel(%arg0: i32, %arg1: i32, %arg2: memref<1x128x128xbf16, #tpu.memory_space<vmem>>, %arg3: memref<9x128x128xbf16, #tpu.memory_space<vmem>>, %arg4: memref<1x128xf32, #tpu.memory_space<vmem>>, %arg5: memref<128x128xf32, #tpu.memory_space<vmem>>, %arg6: memref<128x128xf32, #tpu.memory_space<vmem>>) attributes {dimension_semantics = [#tpu.dimension_semantics<parallel>, #tpu.dimension_semantics<arbitrary>], iteration_bounds = array<i64: 1, 9>, scalar_prefetch = 0 : i64, scratch_operands = 1 : i64, tpu.core_type = #tpu.core_type<tc>, window_params = [{transform_indices = @transform_0, window_bounds = array<i64: 1, 128, 128>}, {pipeline_mode = #tpu.pipeline_mode<synchronous>, transform_indices = @transform_1, window_bounds = array<i64: 9, 128, 128>}, {pipeline_mode = #tpu.pipeline_mode<synchronous>, transform_indices = @transform_2, window_bounds = array<i64: 1, 128>}, {transform_indices = @transform_3, window_bounds = array<i64: 128, 128>}]} {
    %c0_i32 = arith.constant 0 : i32
    %0 = arith.cmpi eq, %arg1, %c0_i32 : i32
    %1 = arith.extui %0 : i1 to i32
    %c0_i32_0 = arith.constant 0 : i32
    %2 = arith.cmpi ne, %1, %c0_i32_0 : i32
    scf.if %2 {
      %cst_10 = arith.constant 0.000000e+00 : f32
      %15 = vector.broadcast %cst_10 : f32 to vector<128x128xf32>
      %c0_11 = arith.constant 0 : index
      %c0_12 = arith.constant 0 : index
      %16 = vector.load %arg6[%c0_11, %c0_12] : memref<128x128xf32, #tpu.memory_space<vmem>>, vector<128x128xf32>
      tpu.vector_store %arg6[%c0_11, %c0_12], %15 {strides = array<i32>} : memref<128x128xf32, #tpu.memory_space<vmem>>, vector<128x128xf32>,
    } else {
    }
    %c0 = arith.constant 0 : index
    %c0_1 = arith.constant 0 : index
    %3 = vector.load %arg6[%c0, %c0_1] : memref<128x128xf32, #tpu.memory_space<vmem>>, vector<128x128xf32>
    %c0_2 = arith.constant 0 : index
    %c0_3 = arith.constant 0 : index
    %c0_4 = arith.constant 0 : index
    %4 = vector.load %arg2[%c0_2, %c0_3, %c0_4] : memref<1x128x128xbf16, #tpu.memory_space<vmem>>, vector<1x128x128xbf16>
    %5 = vector.shape_cast %4 : vector<1x128x128xbf16> to vector<128x128xbf16>
    %6 = arith.index_cast %arg1 : i32 to index
    %c0_5 = arith.constant 0 : index
    %c0_6 = arith.constant 0 : index
    %7 = vector.load %arg3[%6, %c0_5, %c0_6] : memref<9x128x128xbf16, #tpu.memory_space<vmem>>, vector<1x128x128xbf16>
    %8 = vector.shape_cast %7 : vector<1x128x128xbf16> to vector<128x128xbf16>
    %cst = arith.constant dense<0.000000e+00> : vector<128x128xf32>
    %9 = tpu.matmul %5, %8, %cst {dimension_numbers = #tpu.dot_dimension_numbers<[1], [0], [0], [1], [0, 0, 1, 1], [], []>} : vector<128x128xbf16>, vector<128x128xbf16>, vector<128x128xf32> -> vector<128x128xf32>
    %10 = arith.addf %3, %9 : vector<128x128xf32>
    %c0_7 = arith.constant 0 : index
    %c0_8 = arith.constant 0 : index
    %11 = vector.load %arg6[%c0_7, %c0_8] : memref<128x128xf32, #tpu.memory_space<vmem>>, vector<128x128xf32>
    tpu.vector_store %arg6[%c0_7, %c0_8], %10 {strides = array<i32>} : memref<128x128xf32, #tpu.memory_space<vmem>>, vector<128x128xf32>,
    %c8_i32 = arith.constant 8 : i32
    %12 = arith.cmpi eq, %arg1, %c8_i32 : i32
    %13 = arith.extui %12 : i1 to i32
    %c0_i32_9 = arith.constant 0 : i32
    %14 = arith.cmpi ne, %13, %c0_i32_9 : i32
    scf.if %14 {
      %c0_10 = arith.constant 0 : index
      %c0_11 = arith.constant 0 : index
      %15 = vector.load %arg6[%c0_10, %c0_11] : memref<128x128xf32, #tpu.memory_space<vmem>>, vector<128x128xf32>
      %c0_12 = arith.constant 0 : index
      %c0_13 = arith.constant 0 : index
      %16 = vector.load %arg4[%c0_12, %c0_13] : memref<1x128xf32, #tpu.memory_space<vmem>>, vector<1x128xf32>
      %17 = vector.broadcast %16 : vector<1x128xf32> to vector<128x128xf32>
      %18 = arith.addf %15, %17 : vector<128x128xf32>
      %c0_14 = arith.constant 0 : index
      %c0_15 = arith.constant 0 : index
      %19 = vector.load %arg5[%c0_14, %c0_15] : memref<128x128xf32, #tpu.memory_space<vmem>>, vector<128x128xf32>
      tpu.vector_store %arg5[%c0_14, %c0_15], %18 {strides = array<i32>} : memref<128x128xf32, #tpu.memory_space<vmem>>, vector<128x128xf32>,
    } else {
    }
    return
  }
  func.func @transform_0(%arg0: i32, %arg1: i32) -> (i32, i32, i32) {
    %c0_i32 = arith.constant 0 : i32
    %c0_i32_0 = arith.constant 0 : i32
    return %arg1, %arg0, %c0_i32 : i32, i32, i32
  }
  func.func @transform_1(%arg0: i32, %arg1: i32) -> (i32, i32, i32) {
    %c0_i32 = arith.constant 0 : i32
    %c0_i32_0 = arith.constant 0 : i32
    %c0_i32_1 = arith.constant 0 : i32
    %c0_i32_2 = arith.constant 0 : i32
    return %c0_i32, %c0_i32_0, %c0_i32_1 : i32, i32, i32
  }
  func.func @transform_2(%arg0: i32, %arg1: i32) -> (i32, i32) {
    %c0_i32 = arith.constant 0 : i32
    %c0_i32_0 = arith.constant 0 : i32
    %c0_i32_1 = arith.constant 0 : i32
    return %c0_i32, %c0_i32_0 : i32, i32
  }
  func.func @transform_3(%arg0: i32, %arg1: i32) -> (i32, i32) {
    %c0_i32 = arith.constant 0 : i32
    %c0_i32_0 = arith.constant 0 : i32
    return %arg0, %c0_i32 : i32, i32
  }
}

</mosaic_0001>

<llo_original>
// kernel: tpu_custom_call.1
$region0: #{tpu_custom_call.1}
  #allocation0 [shape = 'u32[]', space=smem, size = 0x4, offset = 0x4, fixed_abs, tag = 'smem constant byte address 0x4 - core index']
  #allocation1 [shape = 'u32[72,128]{1,0:T(1,128)}', space=vmem, size = 0x9000, scoped, tag = 'internal scratch']
  #allocation2 [shape = 'f32[128,128]{1,0:T(8,128)}', space=vmem, size = 0x10000, scoped, tag = 'scratch operand']
  %s0 = inlined_call_operand.hbm [shape: bf16[9,128,128], index: 0, kind: input, shape index: {}]
  %s1 = inlined_call_operand.hbm [shape: bf16[9,128,128], index: 1, kind: input, shape index: {}]
  %s2 = inlined_call_operand.vmem [shape: f32[1,128], index: 2, kind: input, shape index: {}]
  %s3 = inlined_call_operand.hbm [shape: f32[128,128], index: 3, kind: output, shape index: {}]
  %s4 = sld [smem:[#allocation0]]
  $region61: #{tpu_custom_call.1} parent=0
    _
  %s6 = ssub.s32 1, %s4
  %s7 = scalar_select 0, %s6, %s4
  $region1: #{tpu_custom_call.1} parent=0
    #allocation3 [shape = 'u8[65536]{0}', space=vmem, size = 0x10000, scoped, tag = 'input window, operand 0']
    #allocation4 [shape = 's32[2]{0}', space=sflag, size = 0x8, scoped, tag = 'scoped memory for tpu_custom_call.1']
    #allocation5 [shape = 's32[2]{0}', space=sflag, size = 0x8, scoped, tag = 'scoped memory for tpu_custom_call.1']
    #allocation6 [shape = 'u8[294912]{0}', space=vmem, size = 0x48000, scoped, tag = 'input window, operand 1, single buffered']
    #allocation7 [shape = 's32[1]{0}', space=sflag, size = 0x4, scoped, tag = 'scoped memory for tpu_custom_call.1']
    #allocation8 [shape = 'u8[65536]{0}', space=vmem, size = 0x10000, scoped, tag = 'output window, operand 0, single buffered']
    %8 = vsyncpa [#allocation4], 0
    %s9 = scalar_lea.sflag [#allocation4], 1
    %10 = vsyncpa %s9, 0
    %11 = vsyncpa [#allocation7], 0
    %12 = vsyncpa [#allocation5], 0
    loop: start=0, step=1, limit=11
    $region2: #{tpu_custom_call.1} parent=1 // loop_pre_header
      _
    $region3: #{tpu_custom_call.1} parent=1 // loop_header
      %s14 = sphi 0, %s18
      %p15 = scmp.ge.s32.totalorder %s14, 11
      %s21 = sphi 0, %s33
      %s22 = sphi 0, %s29
      %s23 = sphi 0, %s21
      %s24 = sphi 0, %s22
      %s25 = sphi 0, %s23
      %s26 = sphi 0, %s24
      %s38 = sphi 0, %s40
      %s41 = sphi 0, %s38
      %s42 = sphi 0, %s41
      %s58 = sphi 0, %s42
      %s62 = sphi 0, %s62
      %s64 = sphi 0, %s62
      %s65 = sphi 0, %s64
      %s79 = sphi 0, %s65
      %s83 = sphi 0, %s83
      %s85 = sphi 0, %s83
      %s86 = sphi 0, %s85
      %s100 = sphi 0, %s86
      %s106 = sphi 0, %s108
      %s109 = sphi 0, %s106
      %s110 = sphi 0, %s109
      %s126 = sphi 0, %s110
    $region4: #{tpu_custom_call.1} parent=1 // loop_header_branch
      %17 = sbr.rel (%p15) target = $region8
    $region5: #{tpu_custom_call.1} parent=1 // loop_body
      %s19 = ssub.s32 %s14, 1
      %s20 = ssub.s32 %s14, 2
      %s27 = sadd.s32 1, %s22
      %p28 = scmp.ge.s32.totalorder %s27, 9
      %s29 = scalar_select %p28, 0, %s27
      %s30 = sadd.s32 1, %s21
      %s31 = scalar_select %p28, %s30, %s21
      %p32 = scmp.ge.s32.totalorder %s31, 1
      %s33 = scalar_select %p32, 0, %s31
      %s34 = ssub.s32 %s22, %s29
      %s35 = ssub.s32 %s21, %s33
      %s36 = sor.u32 %s34, %s35
      %p37 = scmp.eq.s32.totalorder %s36, 0
      %s39 = sadd.s32 %s38, 1
      %s40 = scalar_select %p37, %s38, %s39
      %p43 = pneg %p37
      %p44 = scmp.eq.s32.totalorder %s14, 8
      %p45 = por %p43, %p44
      %p46 = scmp.ne.s32.totalorder %s38, %s41
      %p47 = scmp.eq.s32.totalorder %s14, 0
      %p48 = por %p46, %p47
      %p49 = scmp.ne.s32.totalorder %s38, %s41
      %p50 = scmp.eq.s32.totalorder %s19, 8
      %p51 = por %p49, %p50
      %p52 = scmp.ne.s32.totalorder %s41, %s42
      %p53 = scmp.eq.s32.totalorder %s19, 0
      %p54 = por %p52, %p53
      %p55 = scmp.ne.s32.totalorder %s41, %s42
      %p56 = scmp.eq.s32.totalorder %s20, 8
      %p57 = por %p55, %p56
      %p59 = scmp.ne.s32.totalorder %s42, %s58
      %p60 = scmp.eq.s32.totalorder %s20, 0
      %p61 = por %p59, %p60
      %s63 = sadd.s32 %s62, 1
      %p66 = scmp.eq.s32.totalorder %s14, 8
      %p67 = scmp.ne.s32.totalorder %s62, %s64
      %p68 = scmp.eq.s32.totalorder %s14, 0
      %p69 = por %p67, %p68
      %p70 = scmp.ne.s32.totalorder %s62, %s64
      %p71 = scmp.eq.s32.totalorder %s19, 8
      %p72 = por %p70, %p71
      %p73 = scmp.ne.s32.totalorder %s64, %s65
      %p74 = scmp.eq.s32.totalorder %s19, 0
      %p75 = por %p73, %p74
      %p76 = scmp.ne.s32.totalorder %s64, %s65
      %p77 = scmp.eq.s32.totalorder %s20, 8
      %p78 = por %p76, %p77
      %p80 = scmp.ne.s32.totalorder %s65, %s79
      %p81 = scmp.eq.s32.totalorder %s20, 0
      %p82 = por %p80, %p81
      %s84 = sadd.s32 %s83, 1
      %p87 = scmp.eq.s32.totalorder %s14, 8
      %p88 = scmp.ne.s32.totalorder %s83, %s85
      %p89 = scmp.eq.s32.totalorder %s14, 0
      %p90 = por %p88, %p89
      %p91 = scmp.ne.s32.totalorder %s83, %s85
      %p92 = scmp.eq.s32.totalorder %s19, 8
      %p93 = por %p91, %p92
      %p94 = scmp.ne.s32.totalorder %s85, %s86
      %p95 = scmp.eq.s32.totalorder %s19, 0
      %p96 = por %p94, %p95
      %p97 = scmp.ne.s32.totalorder %s85, %s86
      %p98 = scmp.eq.s32.totalorder %s20, 8
      %p99 = por %p97, %p98
      %p101 = scmp.ne.s32.totalorder %s86, %s100
      %p102 = scmp.eq.s32.totalorder %s20, 0
      %p103 = por %p101, %p102
      %s104 = ssub.s32 %s21, %s33
      %p105 = scmp.eq.s32.totalorder %s104, 0
      %s107 = sadd.s32 %s106, 1
      %s108 = scalar_select %p105, %s106, %s107
      %p111 = pneg %p105
      %p112 = scmp.eq.s32.totalorder %s14, 8
      %p113 = por %p111, %p112
      %p114 = scmp.ne.s32.totalorder %s106, %s109
      %p115 = scmp.eq.s32.totalorder %s14, 0
      %p116 = por %p114, %p115
      %p117 = scmp.ne.s32.totalorder %s106, %s109
      %p118 = scmp.eq.s32.totalorder %s19, 8
      %p119 = por %p117, %p118
      %p120 = scmp.ne.s32.totalorder %s109, %s110
      %p121 = scmp.eq.s32.totalorder %s19, 0
      %p122 = por %p120, %p121
      %p123 = scmp.ne.s32.totalorder %s109, %s110
      %p124 = scmp.eq.s32.totalorder %s20, 8
      %p125 = por %p123, %p124
      %p127 = scmp.ne.s32.totalorder %s110, %s126
      %p128 = scmp.eq.s32.totalorder %s20, 0
      %p129 = por %p127, %p128
      %p130 = scmp.le.s32.totalorder 1, %s14
      %p131 = scmp.lt.s32.totalorder %s14, 10
      %p132 = pnand %p130, %p131
      %p133 = pneg %p132
      // Predicated region
      $region9: #{tpu_custom_call.1} parent=5 // pred_check
        _
      $region10: #{tpu_custom_call.1} parent=5 // pred_check_branch
        %135 = sbr.rel (%p132) target = $region12
      $region11: #{tpu_custom_call.1} parent=5 // pred_region
        %s136 = ssub.s32 %s14, 1
        // Predicated region
        $region13: #{tpu_custom_call.1} parent=11 // pred_check
          %p137 = pneg %p75
        $region14: #{tpu_custom_call.1} parent=11 // pred_check_branch
          %139 = sbr.rel (%p137) target = $region16
        $region15: #{tpu_custom_call.1} parent=11 // pred_region
          %141 = vsyncadd [#allocation7], 0
          %s142 = sshll.u32 %s1, 4
          %s143 = int_to_ptr.hbm [resolvable:$true] %s142
          %s144 = sshll.u32 [#allocation6], 4
          %s145 = int_to_ptr.vmem [resolvable:$true] %s144
          %150 = dma.hbm_to_vmem [thread:$0]  %s143, 9216, %s145, [#allocation7], 64, 64, 4
        $region16: #{tpu_custom_call.1} parent=11 // pred_fallthru
          _
        // Predicated region
        $region17: #{tpu_custom_call.1} parent=11 // pred_check
          %p151 = pneg %p96
        $region18: #{tpu_custom_call.1} parent=11 // pred_check_branch
          %153 = sbr.rel (%p151) target = $region20
        $region19: #{tpu_custom_call.1} parent=11 // pred_region
          _
        $region20: #{tpu_custom_call.1} parent=11 // pred_fallthru
          _
      $region12: #{tpu_custom_call.1} parent=5 // pred_fallthru
        _
      %p154 = scmp.lt.s32.totalorder %s14, 9
      // Predicated region
      $region21: #{tpu_custom_call.1} parent=5 // pred_check
        %p155 = pneg %p154
      $region22: #{tpu_custom_call.1} parent=5 // pred_check_branch
        %157 = sbr.rel (%p155) target = $region24
      $region23: #{tpu_custom_call.1} parent=5 // pred_region
        // Predicated region
        $region25: #{tpu_custom_call.1} parent=23 // pred_check
          %p158 = pneg %p48
        $region26: #{tpu_custom_call.1} parent=23 // pred_check_branch
          %160 = sbr.rel (%p158) target = $region28
        $region27: #{tpu_custom_call.1} parent=23 // pred_region
          %s161 = sand.u32 %s38, 1
          %s162 = scalar_lea.sflag [#allocation4], %s161
          %s163 = sand.u32 %s38, 1
          %s164 = smul.addr %s163, 64
          %s165 = scalar_lea.vmem [#allocation3], %s164
          %s166 = smul.u32 16, %s21
          %168 = vsyncadd %s162, 0
          %s169 = smul.addr %s22, 16
          %s170 = sadd.s32 %s166, %s169
          %s171 = smul.addr %s170, 4
          %s172 = scalar_lea.hbm %s0, %s171
          %s173 = sshll.u32 %s172, 4
          %s174 = int_to_ptr.hbm [resolvable:$true] %s173
          %s175 = sshll.u32 %s165, 4
          %s176 = int_to_ptr.vmem [resolvable:$true] %s175
          %181 = dma.hbm_to_vmem [thread:$0]  %s174, 1024, %s176, %s162, 64, 64, 4
        $region28: #{tpu_custom_call.1} parent=23 // pred_fallthru
          _
      $region24: #{tpu_custom_call.1} parent=5 // pred_fallthru
        _
      %p182 = scmp.le.s32.totalorder 1, %s14
      %p183 = scmp.lt.s32.totalorder %s14, 10
      %p184 = pnand %p182, %p183
      %p185 = pneg %p184
      // Predicated region
      $region29: #{tpu_custom_call.1} parent=5 // pred_check
        _
      $region30: #{tpu_custom_call.1} parent=5 // pred_check_branch
        %187 = sbr.rel (%p184) target = $region32
      $region31: #{tpu_custom_call.1} parent=5 // pred_region
        %s188 = ssub.s32 %s14, 1
        %s189 = sand.u32 %s41, 1
        %s190 = scalar_lea.sflag [#allocation4], %s189
        %s191 = sand.u32 %s41, 1
        %s192 = smul.addr %s191, 64
        %s193 = scalar_lea.vmem [#allocation3], %s192
        // Predicated region
        $region33: #{tpu_custom_call.1} parent=31 // pred_check
          %p194 = pneg %p54
        $region34: #{tpu_custom_call.1} parent=31 // pred_check_branch
          %196 = sbr.rel (%p194) target = $region36
        $region35: #{tpu_custom_call.1} parent=31 // pred_region
          %198 = dma.done %s190, 1024
        $region36: #{tpu_custom_call.1} parent=31 // pred_fallthru
          _
        // Predicated region
        $region37: #{tpu_custom_call.1} parent=31 // pred_check
          %p199 = pneg %p75
        $region38: #{tpu_custom_call.1} parent=31 // pred_check_branch
          %201 = sbr.rel (%p199) target = $region40
        $region39: #{tpu_custom_call.1} parent=31 // pred_region
          %203 = dma.done [#allocation7], 9216
        $region40: #{tpu_custom_call.1} parent=31 // pred_fallthru
          _
        %s204 = sand.u32 %s41, 1
        %s205 = scalar_lea.sflag [#allocation4], %s204
        %s206 = sand.u32 %s41, 1
        %s207 = smul.addr %s206, 64
        %s208 = scalar_lea.vmem [#allocation3], %s207
        %p209 = pneg %p54
        %p210 = pneg %p51
        %p211 = pneg %p75
        %p212 = pneg %p72
        %p213 = pneg %p96
        %p214 = pneg %p93
        %p215 = pneg %p122
        %p216 = pneg %p119
        %s217 = smul.u32 16, %s23
        %s218 = smul.u32 16, %s23
        %p219 = scmp.eq.s32.totalorder %s24, 0
        // Predicated region
        $region41: #{tpu_custom_call.1} parent=31 // pred_check
          %p220 = pneg %p219
        $region42: #{tpu_custom_call.1} parent=31 // pred_check_branch
          %222 = sbr.rel (%p220) target = $region44
        $region43: #{tpu_custom_call.1} parent=31 // pred_region
          %223 = vst [vmem:[#allocation2] sm:$0xff] 0.0
          %224 = vst [vmem:[#allocation2 + $0x8] sm:$0xff] 0.0
          %225 = vst [vmem:[#allocation2 + $0x10] sm:$0xff] 0.0
          %226 = vst [vmem:[#allocation2 + $0x18] sm:$0xff] 0.0
          %227 = vst [vmem:[#allocation2 + $0x20] sm:$0xff] 0.0
          %228 = vst [vmem:[#allocation2 + $0x28] sm:$0xff] 0.0
          %229 = vst [vmem:[#allocation2 + $0x30] sm:$0xff] 0.0
          %230 = vst [vmem:[#allocation2 + $0x38] sm:$0xff] 0.0
          %231 = vst [vmem:[#allocation2 + $0x40] sm:$0xff] 0.0
          %232 = vst [vmem:[#allocation2 + $0x48] sm:$0xff] 0.0
          %233 = vst [vmem:[#allocation2 + $0x50] sm:$0xff] 0.0
          %234 = vst [vmem:[#allocation2 + $0x58] sm:$0xff] 0.0
          %235 = vst [vmem:[#allocation2 + $0x60] sm:$0xff] 0.0
          %236 = vst [vmem:[#allocation2 + $0x68] sm:$0xff] 0.0
          %237 = vst [vmem:[#allocation2 + $0x70] sm:$0xff] 0.0
          %238 = vst [vmem:[#allocation2 + $0x78] sm:$0xff] 0.0
        $region44: #{tpu_custom_call.1} parent=31 // pred_fallthru
          _
        %v239 = vld [vmem:[#allocation2] sm:$0xff]
        %v240 = vld [vmem:[#allocation2 + $0x8] sm:$0xff]
        %v241 = vld [vmem:[#allocation2 + $0x10] sm:$0xff]
        %v242 = vld [vmem:[#allocation2 + $0x18] sm:$0xff]
        %v243 = vld [vmem:[#allocation2 + $0x20] sm:$0xff]
        %v244 = vld [vmem:[#allocation2 + $0x28] sm:$0xff]
        %v245 = vld [vmem:[#allocation2 + $0x30] sm:$0xff]
        %v246 = vld [vmem:[#allocation2 + $0x38] sm:$0xff]
        %v247 = vld [vmem:[#allocation2 + $0x40] sm:$0xff]
        %v248 = vld [vmem:[#allocation2 + $0x48] sm:$0xff]
        %v249 = vld [vmem:[#allocation2 + $0x50] sm:$0xff]
        %v250 = vld [vmem:[#allocation2 + $0x58] sm:$0xff]
        %v251 = vld [vmem:[#allocation2 + $0x60] sm:$0xff]
        %v252 = vld [vmem:[#allocation2 + $0x68] sm:$0xff]
        %v253 = vld [vmem:[#allocation2 + $0x70] sm:$0xff]
        %v254 = vld [vmem:[#allocation2 + $0x78] sm:$0xff]
        %v255 = vld [vmem:[%s193] sm:$0xf]
        %v256 = vld [vmem:[%s193 + $0x4] sm:$0xf]
        %v257 = vld [vmem:[%s193 + $0x8] sm:$0xf]
        %v258 = vld [vmem:[%s193 + $0xc] sm:$0xf]
        %v259 = vld [vmem:[%s193 + $0x10] sm:$0xf]
        %v260 = vld [vmem:[%s193 + $0x14] sm:$0xf]
        %v261 = vld [vmem:[%s193 + $0x18] sm:$0xf]
        %v262 = vld [vmem:[%s193 + $0x1c] sm:$0xf]
        %v263 = vld [vmem:[%s193 + $0x20] sm:$0xf]
        %v264 = vld [vmem:[%s193 + $0x24] sm:$0xf]
        %v265 = vld [vmem:[%s193 + $0x28] sm:$0xf]
        %v266 = vld [vmem:[%s193 + $0x2c] sm:$0xf]
        %v267 = vld [vmem:[%s193 + $0x30] sm:$0xf]
        %v268 = vld [vmem:[%s193 + $0x34] sm:$0xf]
        %v269 = vld [vmem:[%s193 + $0x38] sm:$0xf]
        %v270 = vld [vmem:[%s193 + $0x3c] sm:$0xf]
        %s271 = smul.u32 %s24, 16
        %s272 = smul.addr %s271, 4
        %s273 = scalar_lea.vmem [#allocation6], %s272
        %v274 = vld [vmem:[%s273] sm:$0xf]
        %v275 = vld [vmem:[%s273 + $0x4] sm:$0xf]
        %v276 = vld [vmem:[%s273 + $0x8] sm:$0xf]
        %v277 = vld [vmem:[%s273 + $0xc] sm:$0xf]
        %v278 = vld [vmem:[%s273 + $0x10] sm:$0xf]
        %v279 = vld [vmem:[%s273 + $0x14] sm:$0xf]
        %v280 = vld [vmem:[%s273 + $0x18] sm:$0xf]
        %v281 = vld [vmem:[%s273 + $0x1c] sm:$0xf]
        %v282 = vld [vmem:[%s273 + $0x20] sm:$0xf]
        %v283 = vld [vmem:[%s273 + $0x24] sm:$0xf]
        %v284 = vld [vmem:[%s273 + $0x28] sm:$0xf]
        %v285 = vld [vmem:[%s273 + $0x2c] sm:$0xf]
        %v286 = vld [vmem:[%s273 + $0x30] sm:$0xf]
        %v287 = vld [vmem:[%s273 + $0x34] sm:$0xf]
        %v288 = vld [vmem:[%s273 + $0x38] sm:$0xf]
        %v289 = vld [vmem:[%s273 + $0x3c] sm:$0xf]
        %v306 = vunpack.c.l.b16 %v255
        %v307 = vunpack.c.l.b16 %v256
        %v308 = vunpack.c.l.b16 %v257
        %v309 = vunpack.c.l.b16 %v258
        %v310 = vunpack.c.l.b16 %v259
        %v311 = vunpack.c.l.b16 %v260
        %v312 = vunpack.c.l.b16 %v261
        %v313 = vunpack.c.l.b16 %v262
        %v314 = vunpack.c.l.b16 %v263
        %v315 = vunpack.c.l.b16 %v264
        %v316 = vunpack.c.l.b16 %v265
        %v317 = vunpack.c.l.b16 %v266
        %v318 = vunpack.c.l.b16 %v267
        %v319 = vunpack.c.l.b16 %v268
        %v320 = vunpack.c.l.b16 %v269
        %v321 = vunpack.c.l.b16 %v270
        %v322 = vpack.c.b16 %v307, %v306
        %v323 = vpack.c.b16 %v309, %v308
        %v324 = vpack.c.b16 %v311, %v310
        %v325 = vpack.c.b16 %v313, %v312
        %v326 = vpack.c.b16 %v315, %v314
        %v327 = vpack.c.b16 %v317, %v316
        %v328 = vpack.c.b16 %v319, %v318
        %v329 = vpack.c.b16 %v321, %v320
        %v354 = vunpack.c.l.b16 %v274
        %v355 = vunpack.c.l.b16 %v275
        %v356 = vunpack.c.l.b16 %v276
        %v357 = vunpack.c.l.b16 %v277
        %v358 = vunpack.c.l.b16 %v278
        %v359 = vunpack.c.l.b16 %v279
        %v360 = vunpack.c.l.b16 %v280
        %v361 = vunpack.c.l.b16 %v281
        %v362 = vunpack.c.l.b16 %v282
        %v363 = vunpack.c.l.b16 %v283
        %v364 = vunpack.c.l.b16 %v284
        %v365 = vunpack.c.l.b16 %v285
        %v366 = vunpack.c.l.b16 %v286
        %v367 = vunpack.c.l.b16 %v287
        %v368 = vunpack.c.l.b16 %v288
        %v369 = vunpack.c.l.b16 %v289
        %v370 = vpack.c.b16 %v355, %v354
        %v371 = vpack.c.b16 %v357, %v356
        %v372 = vpack.c.b16 %v359, %v358
        %v373 = vpack.c.b16 %v361, %v360
        %v374 = vpack.c.b16 %v363, %v362
        %v375 = vpack.c.b16 %v365, %v364
        %v376 = vpack.c.b16 %v367, %v366
        %v377 = vpack.c.b16 %v369, %v368
        %386 = vmatpush.bf16.msra.mxu0 %v377
        %387 = vmatpush.bf16.msra.mxu0 %v376
        %388 = vmatpush.bf16.msra.mxu0 %v375
        %389 = vmatpush.bf16.msra.mxu0 %v374
        %390 = vmatpush.bf16.msra.mxu0 %v373
        %391 = vmatpush.bf16.msra.mxu0 %v372
        %392 = vmatpush.bf16.msra.mxu0 %v371
        %393 = vmatpush.bf16.msra.mxu0 %v370
        %394 = vmatmul.bf16.gmra.mxu0 %v322
        %v395 = vpop.f32.mrf.mxu0
        %v396 = vadd.f32 0.0, %v395
        %v397 = vpop.f32.mrf.mxu0
        %v398 = vadd.f32 0.0, %v397
        %399 = vmatmul.bf16.gmra.mxu0 %v323
        %v400 = vpop.f32.mrf.mxu0
        %v401 = vadd.f32 0.0, %v400
        %v402 = vpop.f32.mrf.mxu0
        %v403 = vadd.f32 0.0, %v402
        %404 = vmatmul.bf16.gmra.mxu0 %v324
        %v405 = vpop.f32.mrf.mxu0
        %v406 = vadd.f32 0.0, %v405
        %v407 = vpop.f32.mrf.mxu0
        %v408 = vadd.f32 0.0, %v407
        %409 = vmatmul.bf16.gmra.mxu0 %v325
        %v410 = vpop.f32.mrf.mxu0
        %v411 = vadd.f32 0.0, %v410
        %v412 = vpop.f32.mrf.mxu0
        %v413 = vadd.f32 0.0, %v412
        %414 = vmatmul.bf16.gmra.mxu0 %v326
        %v415 = vpop.f32.mrf.mxu0
        %v416 = vadd.f32 0.0, %v415
        %v417 = vpop.f32.mrf.mxu0
        %v418 = vadd.f32 0.0, %v417
        %419 = vmatmul.bf16.gmra.mxu0 %v327
        %v420 = vpop.f32.mrf.mxu0
        %v421 = vadd.f32 0.0, %v420
        %v422 = vpop.f32.mrf.mxu0
        %v423 = vadd.f32 0.0, %v422
        %424 = vmatmul.bf16.gmra.mxu0 %v328
        %v425 = vpop.f32.mrf.mxu0
        %v426 = vadd.f32 0.0, %v425
        %v427 = vpop.f32.mrf.mxu0
        %v428 = vadd.f32 0.0, %v427
        %429 = vmatmul.bf16.gmra.mxu0 %v329
        %v430 = vpop.f32.mrf.mxu0
        %v431 = vadd.f32 0.0, %v430
        %v432 = vpop.f32.mrf.mxu0
        %v433 = vadd.f32 0.0, %v432
        %434 = vdwg.mxu0
        %v435 = vadd.f32 %v239, %v396
        %v436 = vadd.f32 %v240, %v398
        %v437 = vadd.f32 %v241, %v401
        %v438 = vadd.f32 %v242, %v403
        %v439 = vadd.f32 %v243, %v406
        %v440 = vadd.f32 %v244, %v408
        %v441 = vadd.f32 %v245, %v411
        %v442 = vadd.f32 %v246, %v413
        %v443 = vadd.f32 %v247, %v416
        %v444 = vadd.f32 %v248, %v418
        %v445 = vadd.f32 %v249, %v421
        %v446 = vadd.f32 %v250, %v423
        %v447 = vadd.f32 %v251, %v426
        %v448 = vadd.f32 %v252, %v428
        %v449 = vadd.f32 %v253, %v431
        %v450 = vadd.f32 %v254, %v433
        %451 = vst [vmem:[#allocation2] sm:$0xff] %v435
        %452 = vst [vmem:[#allocation2 + $0x8] sm:$0xff] %v436
        %453 = vst [vmem:[#allocation2 + $0x10] sm:$0xff] %v437
        %454 = vst [vmem:[#allocation2 + $0x18] sm:$0xff] %v438
        %455 = vst [vmem:[#allocation2 + $0x20] sm:$0xff] %v439
        %456 = vst [vmem:[#allocation2 + $0x28] sm:$0xff] %v440
        %457 = vst [vmem:[#allocation2 + $0x30] sm:$0xff] %v441
        %458 = vst [vmem:[#allocation2 + $0x38] sm:$0xff] %v442
        %459 = vst [vmem:[#allocation2 + $0x40] sm:$0xff] %v443
        %460 = vst [vmem:[#allocation2 + $0x48] sm:$0xff] %v444
        %461 = vst [vmem:[#allocation2 + $0x50] sm:$0xff] %v445
        %462 = vst [vmem:[#allocation2 + $0x58] sm:$0xff] %v446
        %463 = vst [vmem:[#allocation2 + $0x60] sm:$0xff] %v447
        %464 = vst [vmem:[#allocation2 + $0x68] sm:$0xff] %v448
        %465 = vst [vmem:[#allocation2 + $0x70] sm:$0xff] %v449
        %466 = vst [vmem:[#allocation2 + $0x78] sm:$0xff] %v450
        %p467 = scmp.eq.s32.totalorder %s24, 8
        // Predicated region
        $region45: #{tpu_custom_call.1} parent=31 // pred_check
          %p468 = pneg %p467
        $region46: #{tpu_custom_call.1} parent=31 // pred_check_branch
          %470 = sbr.rel (%p468) target = $region48
        $region47: #{tpu_custom_call.1} parent=31 // pred_region
          %v471 = vld [vmem:[#allocation2] sm:$0xff]
          %v472 = vld [vmem:[#allocation2 + $0x8] sm:$0xff]
          %v473 = vld [vmem:[#allocation2 + $0x10] sm:$0xff]
          %v474 = vld [vmem:[#allocation2 + $0x18] sm:$0xff]
          %v475 = vld [vmem:[#allocation2 + $0x20] sm:$0xff]
          %v476 = vld [vmem:[#allocation2 + $0x28] sm:$0xff]
          %v477 = vld [vmem:[#allocation2 + $0x30] sm:$0xff]
          %v478 = vld [vmem:[#allocation2 + $0x38] sm:$0xff]
          %v479 = vld [vmem:[#allocation2 + $0x40] sm:$0xff]
          %v480 = vld [vmem:[#allocation2 + $0x48] sm:$0xff]
          %v481 = vld [vmem:[#allocation2 + $0x50] sm:$0xff]
          %v482 = vld [vmem:[#allocation2 + $0x58] sm:$0xff]
          %v483 = vld [vmem:[#allocation2 + $0x60] sm:$0xff]
          %v484 = vld [vmem:[#allocation2 + $0x68] sm:$0xff]
          %v485 = vld [vmem:[#allocation2 + $0x70] sm:$0xff]
          %v486 = vld [vmem:[#allocation2 + $0x78] sm:$0xff]
          %v487 = vld [vmem:[%s2] sm:$0x1]
          %v489 = vperm.slane %v487, 0
          %v491 = vadd.f32 %v471, %v489
          %v492 = vadd.f32 %v472, %v489
          %v493 = vadd.f32 %v473, %v489
          %v494 = vadd.f32 %v474, %v489
          %v495 = vadd.f32 %v475, %v489
          %v496 = vadd.f32 %v476, %v489
          %v497 = vadd.f32 %v477, %v489
          %v498 = vadd.f32 %v478, %v489
          %v499 = vadd.f32 %v479, %v489
          %v500 = vadd.f32 %v480, %v489
          %v501 = vadd.f32 %v481, %v489
          %v502 = vadd.f32 %v482, %v489
          %v503 = vadd.f32 %v483, %v489
          %v504 = vadd.f32 %v484, %v489
          %v505 = vadd.f32 %v485, %v489
          %v506 = vadd.f32 %v486, %v489
          %507 = vst [vmem:[#allocation8] sm:$0xff] %v491
          %508 = vst [vmem:[#allocation8 + $0x8] sm:$0xff] %v492
          %509 = vst [vmem:[#allocation8 + $0x10] sm:$0xff] %v493
          %510 = vst [vmem:[#allocation8 + $0x18] sm:$0xff] %v494
          %511 = vst [vmem:[#allocation8 + $0x20] sm:$0xff] %v495
          %512 = vst [vmem:[#allocation8 + $0x28] sm:$0xff] %v496
          %513 = vst [vmem:[#allocation8 + $0x30] sm:$0xff] %v497
          %514 = vst [vmem:[#allocation8 + $0x38] sm:$0xff] %v498
          %515 = vst [vmem:[#allocation8 + $0x40] sm:$0xff] %v499
          %516 = vst [vmem:[#allocation8 + $0x48] sm:$0xff] %v500
          %517 = vst [vmem:[#allocation8 + $0x50] sm:$0xff] %v501
          %518 = vst [vmem:[#allocation8 + $0x58] sm:$0xff] %v502
          %519 = vst [vmem:[#allocation8 + $0x60] sm:$0xff] %v503
          %520 = vst [vmem:[#allocation8 + $0x68] sm:$0xff] %v504
          %521 = vst [vmem:[#allocation8 + $0x70] sm:$0xff] %v505
          %522 = vst [vmem:[#allocation8 + $0x78] sm:$0xff] %v506
        $region48: #{tpu_custom_call.1} parent=31 // pred_fallthru
          _
        // Predicated region
        $region49: #{tpu_custom_call.1} parent=31 // pred_check
          %p523 = pneg %p119
        $region50: #{tpu_custom_call.1} parent=31 // pred_check_branch
          %525 = sbr.rel (%p523) target = $region52
        $region51: #{tpu_custom_call.1} parent=31 // pred_region
          %s526 = smul.u32 16, %s23
          %528 = vsyncadd [#allocation5], 0
          %s529 = smul.addr %s526, 8
          %s530 = scalar_lea.hbm %s3, %s529
          %s531 = sshll.u32 [#allocation8], 4
          %s532 = int_to_ptr.vmem [resolvable:$true] %s531
          %s533 = sshll.u32 %s530, 4
          %s534 = int_to_ptr.hbm [resolvable:$true] %s533
          %539 = dma.vmem_to_hbm [thread:$0]  %s532, 2048, %s534, [#allocation5], 128, 128, 8
        $region52: #{tpu_custom_call.1} parent=31 // pred_fallthru
          _
        // Predicated region
        $region53: #{tpu_custom_call.1} parent=31 // pred_check
          %p540 = pneg %p119
        $region54: #{tpu_custom_call.1} parent=31 // pred_check_branch
          %542 = sbr.rel (%p540) target = $region56
        $region55: #{tpu_custom_call.1} parent=31 // pred_region
          %544 = dma.done [#allocation5], 2048
        $region56: #{tpu_custom_call.1} parent=31 // pred_fallthru
          _
      $region32: #{tpu_custom_call.1} parent=5 // pred_fallthru
        _
      %p545 = scmp.le.s32.totalorder 2, %s14
      // Predicated region
      $region57: #{tpu_custom_call.1} parent=5 // pred_check
        %p546 = pneg %p545
      $region58: #{tpu_custom_call.1} parent=5 // pred_check_branch
        %548 = sbr.rel (%p546) target = $region60
      $region59: #{tpu_custom_call.1} parent=5 // pred_region
        %s549 = ssub.s32 %s14, 2
      $region60: #{tpu_custom_call.1} parent=5 // pred_fallthru
        _
    $region6: #{tpu_custom_call.1} parent=1 // loop_footer
      %s18 = sadd.s32 1, %s14
    $region7: #{tpu_custom_call.1} parent=1 // loop_footer_branch
      %13 = sbr.rel target = $region3
    $region8: #{tpu_custom_call.1} parent=1 // loop_exit
      _
    %550 = vsyncpa [#allocation4], 1
    %s551 = scalar_lea.sflag [#allocation4], 1
    %552 = vsyncpa %s551, 1
    %553 = vsyncpa [#allocation7], 1
    %554 = vsyncpa [#allocation5], 1
    %s555 = scalar_lea.sflag [#allocation5], 1
    %556 = vsyncpa %s555, 1

</llo_original>
